<compile_context>
chip_gen: v5e
topology: v5e:2x2
jax: 0.10.0
libtpu: 0.0.40
codegen_flags: <defaults>
</compile_context>

<pallas_src>
import functools

import jax
import jax.numpy as jnp
from jax.experimental import pallas as pl
from jax.experimental.pallas import tpu as pltpu

_LANE = 128
_VMEM_TARGET_BYTES = 30 * (1 << 20)   # keep the working set v7x-safe (64 MiB physical)


def _round_up(n, m):
    return ((n + m - 1) // m) * m


def _mlp_kernel(x_ref, w1_ref, b1_ref, w2_ref, b2_ref, o_ref, *, compute_dtype):
    # x_ref : [tile_b, F]  caller dtype (natural layout, straight from HBM)
    # w1_ref: [F, H]       compute_dtype (resident across the grid)
    # b1_ref: [1, H]  f32
    # w2_ref: [H, 1]       compute_dtype
    # b2_ref: [1, 1]  f32  scalar in SMEM
    # o_ref : [tile_b, 1]
    x = x_ref[...].astype(compute_dtype)
    h = jnp.dot(x, w1_ref[...], preferred_element_type=jnp.float32)    # MXU, [tile_b, H]
    h = jnp.maximum(h + b1_ref[...], 0.0)                              # bias + ReLU (VPU)
    y = jnp.dot(h.astype(compute_dtype), w2_ref[...],
                preferred_element_type=jnp.float32)                    # MXU, [tile_b, 1]
    o_ref[...] = (y + b2_ref[0, 0]).astype(o_ref.dtype)


def _vmem_bytes(tile_b, F, H, x_itemsize, w_itemsize, out_itemsize):
    """Rough double-buffered VMEM working-set estimate (lane dims pad to 128)."""
    f_l = _round_up(F, _LANE)
    h_l = _round_up(H, _LANE)
    est = 2 * tile_b * f_l * x_itemsize               # x tiles
    est += 2 * _round_up(F, 8) * h_l * w_itemsize     # w1 (resident)
    est += 2 * 8 * h_l * 4                            # b1 row
    est += 2 * _round_up(H, 8) * _LANE * w_itemsize   # w2 column
    est += 2 * tile_b * _LANE * out_itemsize          # output tiles
    est += 2 * tile_b * h_l * 4                       # hidden activations / acc temps
    return est


def _pick_tile_b(B, granule):
    if B <= 4 * granule:
        return _round_up(B, granule)
    # Big tiles amortize per-grid-step overhead; keep >= 4 steps so
    # dimension_semantics=("parallel",) has work to split across TCs (v7x).
    return max(granule, min(1024, _round_up(-(-B // 4), granule)))


def prepare_params(w1, b1, w2, b2, *, compute_dtype=jnp.bfloat16):
    """One-time weight preprocessing (hoisted out of the per-call wrapper).

    w1: [F, H] (transpose of PyTorch's [H, F]);  b1: [H];  w2: [H, 1];  b2: scalar.
    """
    w1c = jnp.asarray(w1, compute_dtype)                       # [F, H]
    b1r = jnp.asarray(b1, jnp.float32).reshape(1, -1)          # [1, H]
    w2c = jnp.asarray(w2, compute_dtype).reshape(-1, 1)        # [H, 1]
    b2s = jnp.asarray(b2, jnp.float32).reshape(1, 1)           # [1, 1] -> SMEM
    return w1c, b1r, w2c, b2s


def neural_network_forward(x, params, *, tile_b=None):
    """Forward pass of the 2-layer reward MLP.  x: [B, F] -> [B, 1] in x.dtype."""
    w1c, b1r, w2c, b2s = params
    B, F = x.shape
    H = w1c.shape[1]
    if w2c.shape[1] != 1:
        # TODO(synk): output_size > 1 would need b2 as a VMEM row + (tile_b, O) out block.
        raise NotImplementedError("optimized kernel assumes output_size == 1")

    x_itemsize = jnp.dtype(x.dtype).itemsize
    w_itemsize = jnp.dtype(w1c.dtype).itemsize
    out_itemsize = x_itemsize
    granule = 8 if x_itemsize >= 4 else 16          # sublane granule of the batch tile
    tile_b = _pick_tile_b(B, granule) if tile_b is None else _round_up(tile_b, granule)

    # Shrink the batch tile until the double-buffered working set is VMEM-safe
    # on every generation (v7x: 64 MiB physical; v5e default scoped: 16 MiB).
    while (tile_b > granule and
           _vmem_bytes(tile_b, F, H, x_itemsize, w_itemsize, out_itemsize)
           > _VMEM_TARGET_BYTES):
        tile_b = max(granule, _round_up(tile_b // 2, granule))
    # TODO(synk): very large F/H would additionally need a K/N-tiled reduction grid.
    est = _vmem_bytes(tile_b, F, H, x_itemsize, w_itemsize, out_itemsize)
    vmem_limit = int(min(48 * (1 << 20), max(32 * (1 << 20), 1.5 * est)))

    kernel = functools.partial(_mlp_kernel, compute_dtype=w1c.dtype)
    return pl.pallas_call(
        kernel,
        out_shape=jax.ShapeDtypeStruct((B, 1), x.dtype),
        grid=(pl.cdiv(B, tile_b),),
        in_specs=[
            pl.BlockSpec((tile_b, F), lambda i: (i, 0)),        # x batch tile (natural)
            pl.BlockSpec((F, H), lambda i: (0, 0)),             # W1 resident
            pl.BlockSpec((1, H), lambda i: (0, 0)),             # b1 row
            pl.BlockSpec((H, 1), lambda i: (0, 0)),             # w2 column
            pl.BlockSpec((1, 1), lambda i: (0, 0),
                         memory_space=pltpu.MemorySpace.SMEM),  # b2 scalar
        ],
        out_specs=pl.BlockSpec((tile_b, 1), lambda i: (i, 0)),
        compiler_params=pltpu.CompilerParams(
            dimension_semantics=("parallel",),
            vmem_limit_bytes=vmem_limit),
    )(x, w1c, b1r, w2c, b2s)


def init_params(key, input_size, hidden_size, output_size=1):
    """Deterministic init mimicking nn.Linear's U(-1/sqrt(fan_in), 1/sqrt(fan_in))."""
    k1, k2, k3, k4 = jax.random.split(key, 4)
    bound1 = 1.0 / jnp.sqrt(jnp.float32(input_size))
    bound2 = 1.0 / jnp.sqrt(jnp.float32(hidden_size))
    # stored as [in, out] (transpose of PyTorch's [out, in]) so math is x @ W
    w1 = jax.random.uniform(k1, (input_size, hidden_size), jnp.float32, -bound1, bound1)
    b1 = jax.random.uniform(k2, (hidden_size,), jnp.float32, -bound1, bound1)
    w2 = jax.random.uniform(k3, (hidden_size, output_size), jnp.float32, -bound2, bound2)
    b2 = jax.random.uniform(k4, (output_size,), jnp.float32, -bound2, bound2)
    return w1, b1, w2, b2


if __name__ == "__main__":
    # Small shapes consistent with the module: batch=8, input=32, hidden=32, out=1
    batch, input_size, hidden_size, output_size = 8, 32, 32, 1

    key = jax.random.PRNGKey(0)
    kx, kp = jax.random.split(key)
    x = jax.random.normal(kx, (batch, input_size), jnp.float32)
    w1, b1, w2, b2 = init_params(kp, input_size, hidden_size, output_size)

    # Plain-JAX reference (same math as the PyTorch module).
    ref = jnp.maximum(x @ w1 + b1[None, :], 0.0) @ w2 + b2[None, :]

    # Default path: bf16 MXU operands (all TPU generations), f32 accumulation.
    params_bf16 = prepare_params(w1, b1, w2, b2)                      # hoisted, done once
    y = neural_network_forward(x, params_bf16)
    jax.block_until_ready(y)
    assert y.shape == (batch, output_size)
    assert jnp.allclose(y, ref, atol=5e-2, rtol=5e-2)

    # f32 path for tight numerics.
    params_f32 = prepare_params(w1, b1, w2, b2, compute_dtype=jnp.float32)
    y32 = neural_network_forward(x, params_f32)
    jax.block_until_ready(y32)
    assert y32.shape == (batch, output_size)
    assert jnp.allclose(y32, ref, atol=1e-4, rtol=1e-4)

    # Multi-tile + ragged batch: exercises the partial last block (masked OOB rows).
    xb = jax.random.normal(kx, (50, input_size), jnp.float32)
    refb = jnp.maximum(xb @ w1 + b1[None, :], 0.0) @ w2 + b2[None, :]
    yb = neural_network_forward(xb, params_f32)
    jax.block_until_ready(yb)
    assert yb.shape == (50, 1)
    assert jnp.allclose(yb, refb, atol=1e-4, rtol=1e-4)

    print("KERNEL_OK")
</pallas_src>

<mosaic_0001>
module attributes {stable_mosaic.version = 11 : i64} {
  func.func @_mlp_kernel(%arg0: i32, %arg1: memref<8x32xf32, #tpu.memory_space<vmem>>, %arg2: memref<32x32xbf16, #tpu.memory_space<vmem>>, %arg3: memref<1x32xf32, #tpu.memory_space<vmem>>, %arg4: memref<32x1xbf16, #tpu.memory_space<vmem>>, %arg5: memref<1x1xf32, #tpu.memory_space<smem>>, %arg6: memref<8x1xf32, #tpu.memory_space<vmem>>) attributes {dimension_semantics = [#tpu.dimension_semantics<parallel>], iteration_bounds = array<i64: 1>, scalar_prefetch = 0 : i64, scratch_operands = 0 : i64, tpu.core_type = #tpu.core_type<tc>, window_params = [{transform_indices = @transform_0, window_bounds = array<i64: 8, 32>}, {pipeline_mode = #tpu.pipeline_mode<synchronous>, transform_indices = @transform_1, window_bounds = array<i64: 32, 32>}, {pipeline_mode = #tpu.pipeline_mode<synchronous>, transform_indices = @transform_2, window_bounds = array<i64: 1, 32>}, {pipeline_mode = #tpu.pipeline_mode<synchronous>, transform_indices = @transform_3, window_bounds = array<i64: 32, 1>}, {transform_indices = @transform_4, window_bounds = array<i64: 1, 1>}, {transform_indices = @transform_5, window_bounds = array<i64: 8, 1>}]} {
    %c0 = arith.constant 0 : index
    %c0_0 = arith.constant 0 : index
    %0 = vector.load %arg1[%c0, %c0_0] : memref<8x32xf32, #tpu.memory_space<vmem>>, vector<8x32xf32>
    %1 = arith.truncf %0 : vector<8x32xf32> to vector<8x32xbf16>
    %c0_1 = arith.constant 0 : index
    %c0_2 = arith.constant 0 : index
    %2 = vector.load %arg2[%c0_1, %c0_2] : memref<32x32xbf16, #tpu.memory_space<vmem>>, vector<32x32xbf16>
    %cst = arith.constant dense<0.000000e+00> : vector<8x32xf32>
    %3 = tpu.matmul %1, %2, %cst {dimension_numbers = #tpu.dot_dimension_numbers<[1], [0], [0], [1], [0, 0, 1, 1], [], []>} : vector<8x32xbf16>, vector<32x32xbf16>, vector<8x32xf32> -> vector<8x32xf32>
    %c0_3 = arith.constant 0 : index
    %c0_4 = arith.constant 0 : index
    %4 = vector.load %arg3[%c0_3, %c0_4] : memref<1x32xf32, #tpu.memory_space<vmem>>, vector<1x32xf32>
    %5 = vector.broadcast %4 : vector<1x32xf32> to vector<8x32xf32>
    %6 = arith.addf %3, %5 : vector<8x32xf32>
    %cst_5 = arith.constant 0.000000e+00 : f32
    %7 = vector.broadcast %cst_5 : f32 to vector<8x32xf32>
    %8 = arith.maximumf %6, %7 : vector<8x32xf32>
    %9 = arith.truncf %8 : vector<8x32xf32> to vector<8x32xbf16>
    %c0_6 = arith.constant 0 : index
    %c0_7 = arith.constant 0 : index
    %10 = vector.load %arg4[%c0_6, %c0_7] : memref<32x1xbf16, #tpu.memory_space<vmem>>, vector<32x1xbf16>
    %cst_8 = arith.constant dense<0.000000e+00> : vector<8x1xf32>
    %11 = tpu.matmul %9, %10, %cst_8 {dimension_numbers = #tpu.dot_dimension_numbers<[1], [0], [0], [1], [0, 0, 1, 1], [], []>} : vector<8x32xbf16>, vector<32x1xbf16>, vector<8x1xf32> -> vector<8x1xf32>
    %c0_9 = arith.constant 0 : index
    %c0_10 = arith.constant 0 : index
    %12 = memref.load %arg5[%c0_9, %c0_10] : memref<1x1xf32, #tpu.memory_space<smem>>
    %13 = vector.broadcast %12 : f32 to vector<8x1xf32>
    %14 = arith.addf %11, %13 : vector<8x1xf32>
    %c0_11 = arith.constant 0 : index
    %c0_12 = arith.constant 0 : index
    %15 = vector.load %arg6[%c0_11, %c0_12] : memref<8x1xf32, #tpu.memory_space<vmem>>, vector<8x1xf32>
    tpu.vector_store %arg6[%c0_11, %c0_12], %14 {strides = array<i32>} : memref<8x1xf32, #tpu.memory_space<vmem>>, vector<8x1xf32>,
    return
  }
  func.func @transform_0(%arg0: i32) -> (i32, i32) {
    %c0_i32 = arith.constant 0 : i32
    %c0_i32_0 = arith.constant 0 : i32
    return %arg0, %c0_i32 : i32, i32
  }
  func.func @transform_1(%arg0: i32) -> (i32, i32) {
    %c0_i32 = arith.constant 0 : i32
    %c0_i32_0 = arith.constant 0 : i32
    %c0_i32_1 = arith.constant 0 : i32
    return %c0_i32, %c0_i32_0 : i32, i32
  }
  func.func @transform_2(%arg0: i32) -> (i32, i32) {
    %c0_i32 = arith.constant 0 : i32
    %c0_i32_0 = arith.constant 0 : i32
    %c0_i32_1 = arith.constant 0 : i32
    return %c0_i32, %c0_i32_0 : i32, i32
  }
  func.func @transform_3(%arg0: i32) -> (i32, i32) {
    %c0_i32 = arith.constant 0 : i32
    %c0_i32_0 = arith.constant 0 : i32
    %c0_i32_1 = arith.constant 0 : i32
    return %c0_i32, %c0_i32_0 : i32, i32
  }
  func.func @transform_4(%arg0: i32) -> (i32, i32) {
    %c0_i32 = arith.constant 0 : i32
    %c0_i32_0 = arith.constant 0 : i32
    %c0_i32_1 = arith.constant 0 : i32
    return %c0_i32, %c0_i32_0 : i32, i32
  }
  func.func @transform_5(%arg0: i32) -> (i32, i32) {
    %c0_i32 = arith.constant 0 : i32
    %c0_i32_0 = arith.constant 0 : i32
    return %arg0, %c0_i32 : i32, i32
  }
}

</mosaic_0001>

<llo_original>
// kernel: tpu_custom_call.1
$region0: #{tpu_custom_call.1}
  #allocation0 [shape = 'u32[]', space=smem, size = 0x4, offset = 0x4, fixed_abs, tag = 'smem constant byte address 0x4 - core index']
  #allocation1 [shape = 'u32[72,128]{1,0:T(1,128)}', space=vmem, size = 0x9000, scoped, tag = 'internal scratch']
  #allocation2 [shape = 'f32[1,1]{1,0:T(1,128)S(6)}', space=smem, size = 0x200, scoped, tag = 'scoped memory for tpu_custom_call.1']
  %s0 = inlined_call_operand.hbm [shape: f32[8,32], index: 0, kind: input, shape index: {}]
  %s1 = inlined_call_operand.vmem [shape: bf16[32,32], index: 1, kind: input, shape index: {}]
  %s2 = inlined_call_operand.vmem [shape: f32[1,32], index: 2, kind: input, shape index: {}]
  %s3 = inlined_call_operand.vmem [shape: bf16[32,1], index: 3, kind: input, shape index: {}]
  %s4 = inlined_call_operand.<no memory space> [shape: f32[1,1], index: 4, kind: input, shape index: {}]
  %s5 = inlined_call_operand.vmem [shape: f32[8,1], index: 5, kind: output, shape index: {}]
  %s6 = sld [smem:[#allocation0]]
  $region34: #{tpu_custom_call.1} parent=0
    _
  %s8 = ssub.s32 1, %s6
  %s9 = scalar_select 0, %s8, %s6
  %10 = sst [smem:[#allocation2]] %s4
  $region1: #{tpu_custom_call.1} parent=0
    #allocation3 [shape = 'u8[4096]{0}', space=vmem, size = 0x1000, scoped, tag = 'input window, operand 0, single buffered']
    #allocation4 [shape = 's32[1]{0}', space=sflag, size = 0x4, scoped, tag = 'scoped memory for tpu_custom_call.1']
    %11 = vsyncpa [#allocation4], 0
    // Predicated region
    $region2: #{tpu_custom_call.1} parent=1 // pred_check
      _
    $region3: #{tpu_custom_call.1} parent=1 // pred_check_branch
      %13 = sbr.rel (0) target = $region5
    $region4: #{tpu_custom_call.1} parent=1 // pred_region
      %15 = vsyncadd [#allocation4], 0
      %s17 = sshll.u32 %s0, 4
      %s18 = int_to_ptr.hbm [resolvable:$true] %s17
      %s19 = sshll.u32 [#allocation3], 4
      %s20 = int_to_ptr.vmem [resolvable:$true] %s19
      %22 = dma.hbm_to_vmem [thread:$0]  %s18, 128, %s20, [#allocation4]
    $region5: #{tpu_custom_call.1} parent=1 // pred_fallthru
      _
    // Predicated region
    $region6: #{tpu_custom_call.1} parent=1 // pred_check
      _
    $region7: #{tpu_custom_call.1} parent=1 // pred_check_branch
      %24 = sbr.rel (0) target = $region9
    $region8: #{tpu_custom_call.1} parent=1 // pred_region
      _
    $region9: #{tpu_custom_call.1} parent=1 // pred_fallthru
      _
    // Predicated region
    $region10: #{tpu_custom_call.1} parent=1 // pred_check
      _
    $region11: #{tpu_custom_call.1} parent=1 // pred_check_branch
      %26 = sbr.rel (0) target = $region13
    $region12: #{tpu_custom_call.1} parent=1 // pred_region
      _
    $region13: #{tpu_custom_call.1} parent=1 // pred_fallthru
      _
    // Predicated region
    $region14: #{tpu_custom_call.1} parent=1 // pred_check
      _
    $region15: #{tpu_custom_call.1} parent=1 // pred_check_branch
      %28 = sbr.rel (0) target = $region17
    $region16: #{tpu_custom_call.1} parent=1 // pred_region
      _
    $region17: #{tpu_custom_call.1} parent=1 // pred_fallthru
      _
    // Predicated region
    $region18: #{tpu_custom_call.1} parent=1 // pred_check
      _
    $region19: #{tpu_custom_call.1} parent=1 // pred_check_branch
      %30 = sbr.rel (0) target = $region21
    $region20: #{tpu_custom_call.1} parent=1 // pred_region
      _
    $region21: #{tpu_custom_call.1} parent=1 // pred_fallthru
      _
    // Predicated region
    $region22: #{tpu_custom_call.1} parent=1 // pred_check
      _
    $region23: #{tpu_custom_call.1} parent=1 // pred_check_branch
      %32 = sbr.rel (0) target = $region25
    $region24: #{tpu_custom_call.1} parent=1 // pred_region
      %34 = dma.done [#allocation4], 128
    $region25: #{tpu_custom_call.1} parent=1 // pred_fallthru
      _
    %v36 = vld [vmem:[#allocation3] sm:$0xff]
    %v37 = vpack.c.bf16 %v36, %v36
    %v38 = vld [vmem:[%s1] sm:$0xf]
    %v39 = vld [vmem:[%s1 + $0x4] sm:$0xf]
    %v40 = vld [vmem:[%s1 + $0x8] sm:$0xf]
    %v41 = vld [vmem:[%s1 + $0xc] sm:$0xf]
    %v42 = vld [vmem:[%s2] sm:$0x1]
    %v44 = vperm.slane %v42, 0
    %v50 = vunpack.c.l.b16 %v38
    %v51 = vunpack.c.l.b16 %v39
    %v52 = vunpack.c.l.b16 %v40
    %v53 = vunpack.c.l.b16 %v41
    %v54 = vpack.c.b16 %v51, %v50
    %v55 = vpack.c.b16 %v53, %v52
    %vm58 = vcmask 261120
    %v60 = vsel %vm58, %v37, 0
    %62 = vmatpush.bf16.msra.mxu0 0
    %63 = vmatpush.bf16.msra.mxu0 0
    %64 = vmatpush.bf16.msra.mxu0 0
    %65 = vmatpush.bf16.msra.mxu0 0
    %66 = vmatpush.bf16.msra.mxu0 0
    %67 = vmatpush.bf16.msra.mxu0 0
    %68 = vmatpush.bf16.msra.mxu0 %v55
    %69 = vmatpush.bf16.msra.mxu0 %v54
    %70 = vmatmul.bf16.gmra.mxu0 %v60
    %v71 = vpop.f32.mrf.mxu0
    %v72 = vadd.f32 %v44, %v71
    %v73 = vpop.f32.mrf.mxu0
    %74 = vdwg.mxu0
    %v75 = vmax.f32 %v72, 0.0
    %v76 = vpack.c.bf16 %v75, %v75
    %v77 = vld [vmem:[%s3] sm:$0xf]
    %v78 = vld [vmem:[%s3 + $0x4] sm:$0xf]
    %v79 = vld [vmem:[%s3 + $0x8] sm:$0xf]
    %v80 = vld [vmem:[%s3 + $0xc] sm:$0xf]
    %s81 = sld [smem:[#allocation2]]
    %v82 = vstv %s81
    %v87 = vunpack.c.l.b16 %v77
    %v88 = vunpack.c.l.b16 %v78
    %v89 = vunpack.c.l.b16 %v79
    %v90 = vunpack.c.l.b16 %v80
    %v91 = vpack.c.b16 %v88, %v87
    %v92 = vpack.c.b16 %v90, %v89
    %v96 = vsel %vm58, %v76, 0
    %98 = vmatpush.bf16.msra.mxu0 0
    %99 = vmatpush.bf16.msra.mxu0 0
    %100 = vmatpush.bf16.msra.mxu0 0
    %101 = vmatpush.bf16.msra.mxu0 0
    %102 = vmatpush.bf16.msra.mxu0 0
    %103 = vmatpush.bf16.msra.mxu0 0
    %104 = vmatpush.bf16.msra.mxu0 %v92
    %105 = vmatpush.bf16.msra.mxu0 %v91
    %106 = vmatmul.bf16.gmra.mxu0 %v96
    %v107 = vpop.f32.mrf.mxu0
    %v108 = vadd.f32 %v82, %v107
    %v109 = vpop.f32.mrf.mxu0
    %110 = vdwg.mxu0
    %vm111 = vcmask 7168
    %112 = vst.msk [vmem:[%s5] sm:$0xff] %vm111, %v108
    // Predicated region
    $region26: #{tpu_custom_call.1} parent=1 // pred_check
      _
    $region27: #{tpu_custom_call.1} parent=1 // pred_check_branch
      %114 = sbr.rel (0) target = $region29
    $region28: #{tpu_custom_call.1} parent=1 // pred_region
      _
    $region29: #{tpu_custom_call.1} parent=1 // pred_fallthru
      _
    // Predicated region
    $region30: #{tpu_custom_call.1} parent=1 // pred_check
      _
    $region31: #{tpu_custom_call.1} parent=1 // pred_check_branch
      %116 = sbr.rel (0) target = $region33
    $region32: #{tpu_custom_call.1} parent=1 // pred_region
      _
    $region33: #{tpu_custom_call.1} parent=1 // pred_fallthru
      _
    %117 = vsyncpa [#allocation4], 1

</llo_original>
